<compile_context>
chip_gen: v6e
topology: v6e:2x2x1
jax: 0.10.0
libtpu: 0.0.40
codegen_flags: <defaults>
</compile_context>

<pallas_src>
import jax
import jax.numpy as jnp
from jax.experimental import pallas as pl
from jax.experimental.pallas import tpu as pltpu


def _scaled_embedding_gather_kernel(idx_ref, scale_ref, w_hbm, out_ref,
                                    row_buf, copy_sems):
    # idx_ref:   (N_pad,)  int32 SMEM   — scalar-prefetched token indices
    # scale_ref: (1,)      f32   SMEM   — learnable log-scale
    # w_hbm:     (V, D_pad) HBM ref     — embedding table (stays in HBM)
    # out_ref:   (TN, D_pad) VMEM       — output block for this grid step
    # row_buf:   (TN, D_pad) VMEM scratch
    # copy_sems: (TN,) DMA semaphores
    tn = out_ref.shape[0]
    base = pl.program_id(0) * tn

    # Issue one row DMA per output row; all TN copies are in flight together.
    @pl.loop(0, tn)
    def _issue(r):
        row = idx_ref[base + r]
        pltpu.make_async_copy(
            w_hbm.at[pl.ds(row, 1), :],
            row_buf.at[pl.ds(r, 1), :],
            copy_sems.at[r],
        ).start()

    # Wait for all row copies of this block.
    @pl.loop(0, tn)
    def _wait(r):
        pltpu.make_async_copy(
            w_hbm.at[pl.ds(0, 1), :],
            row_buf.at[pl.ds(r, 1), :],
            copy_sems.at[r],
        ).wait()

    # exp(scale) on a tiny (1,1) vector (EUP), then broadcast-multiply (VPU).
    scale_tile = jnp.exp(jnp.full((1, 1), scale_ref[0], jnp.float32))
    out_ref[...] = (row_buf[...].astype(jnp.float32) * scale_tile).astype(out_ref.dtype)


def scaled_embedding(indices, weight, scale, *, block_rows=64):
    """indices: int array of arbitrary shape; weight: (V, D); scale: () log-scale."""
    in_shape = indices.shape
    v, d = weight.shape

    idx_flat = indices.reshape(-1).astype(jnp.int32)
    # torch raises on out-of-range indices; clamp so the HBM DMA gather stays in-bounds.
    idx_flat = jnp.clip(idx_flat, 0, v - 1)
    n = idx_flat.shape[0]

    # Lane-dense embedding dim: pad D up to a multiple of 128 (unmasked stores).
    d_pad = ((d + 127) // 128) * 128
    weight_p = weight if d_pad == d else jnp.pad(weight, ((0, 0), (0, d_pad - d)))

    # Row-block size: multiple of 8 (sublane), amortizes per-grid-step overhead.
    tn = min(block_rows, ((n + 7) // 8) * 8)
    n_pad = ((n + tn - 1) // tn) * tn
    if n_pad != n:
        idx_flat = jnp.pad(idx_flat, (0, n_pad - n))  # pad with index 0 (valid row)

    scale_smem = jnp.reshape(scale.astype(jnp.float32), (1,))

    out = pl.pallas_call(
        _scaled_embedding_gather_kernel,
        out_shape=jax.ShapeDtypeStruct((n_pad, d_pad), weight.dtype),
        grid_spec=pltpu.PrefetchScalarGridSpec(
            num_scalar_prefetch=1,                 # idx_flat -> SMEM, visible to index_maps
            grid=(n_pad // tn,),
            in_specs=[
                pl.BlockSpec(memory_space=pltpu.MemorySpace.SMEM),  # scale (1,) scalar
                pl.BlockSpec(memory_space=pl.ANY),                  # weight stays in HBM
            ],
            out_specs=pl.BlockSpec((tn, d_pad), lambda b, idx_ref: (b, 0)),
            scratch_shapes=[
                pltpu.VMEM((tn, d_pad), weight.dtype),
                pltpu.SemaphoreType.DMA((tn,)),
            ],
        ),
        compiler_params=pltpu.CompilerParams(
            dimension_semantics=("parallel",),      # row-blocks shard across v7x's 2 TCs
        ),
    )(idx_flat, scale_smem, weight_p)

    out = out[:n, :d]
    return out.reshape(*in_shape, d)


def init_scaled_embedding_params(key, num_embeddings, embedding_dim,
                                 padding_idx=None, initial_speed=1.0):
    """Mirror ScaledEmbedding.reset_parameters deterministically."""
    std = 0.1 / initial_speed
    weight = std * jax.random.normal(key, (num_embeddings, embedding_dim),
                                     dtype=jnp.float32)
    scale = jnp.log(jnp.float32(1.0 / std))        # scalar log-scale
    if padding_idx is not None:
        if padding_idx < 0:
            padding_idx = num_embeddings + padding_idx
        weight = weight.at[padding_idx].set(0.0)
    return weight, scale


# TODO(synk): forward only — training use needs a custom VJP (scatter-add grad for
# weight with the padding row masked, plus the exp(scale) chain rule); sparse /
# scale_grad_by_freq gradient options have no forward-pass effect and are not modeled.


if __name__ == "__main__":
    num_embeddings = 32
    embedding_dim = 32
    padding_idx = 0

    key = jax.random.PRNGKey(0)
    k_w, k_idx = jax.random.split(key)

    weight, scale = init_scaled_embedding_params(
        k_w, num_embeddings, embedding_dim, padding_idx=padding_idx)

    # A batch of 2 samples of 8 indices each (LongTensor equivalent -> int32).
    indices = jax.random.randint(k_idx, (2, 8), 0, num_embeddings, dtype=jnp.int32)

    out = scaled_embedding(indices, weight, scale)
    out = jax.block_until_ready(out)

    # Pure-JAX reference for sanity.
    ref = jnp.take(weight, indices, axis=0) * jnp.exp(scale)
    assert out.shape == (2, 8, embedding_dim)
    assert jnp.allclose(out, ref, atol=1e-5, rtol=1e-5)
    # Padding rows (index 0) must be zero.
    assert jnp.allclose(out[indices == padding_idx], 0.0)

    print("KERNEL_OK")
</pallas_src>

<mosaic_0001>
module attributes {stable_mosaic.version = 11 : i64} {
  func.func @_scaled_embedding_gather_kernel(%arg0: i32, %arg1: memref<16xi32, #tpu.memory_space<smem>>, %arg2: memref<1xf32, #tpu.memory_space<smem>>, %arg3: memref<32x128xf32, #tpu.memory_space<any>>, %arg4: memref<16x128xf32, #tpu.memory_space<vmem>>, %arg5: memref<16x128xf32, #tpu.memory_space<vmem>>, %arg6: memref<16x!tpu.dma_semaphore, #tpu.memory_space<semaphore_mem>>) attributes {dimension_semantics = [#tpu.dimension_semantics<parallel>], iteration_bounds = array<i64: 1>, scalar_prefetch = 1 : i64, scratch_operands = 2 : i64, tpu.core_type = #tpu.core_type<tc>, window_params = [{transform_indices = @transform_0, window_bounds = array<i64: 1>}, {}, {transform_indices = @transform_2, window_bounds = array<i64: 16, 128>}]} {
    %c16_i32 = arith.constant 16 : i32
    %0 = arith.muli %arg0, %c16_i32 : i32
    %c0_i32 = arith.constant 0 : i32
    %c16_i32_0 = arith.constant 16 : i32
    %1 = arith.addi %c0_i32, %c16_i32_0 : i32
    %c1_i32 = arith.constant 1 : i32
    scf.for %arg7 = %c0_i32 to %1 step %c1_i32  : i32 {
      %c1_i32_10 = arith.constant 1 : i32
      %10 = arith.muli %arg7, %c1_i32_10 : i32
      %c0_i32_11 = arith.constant 0 : i32
      %11 = arith.addi %c0_i32_11, %10 : i32
      %12 = arith.addi %0, %11 : i32
      %13 = arith.index_cast %12 : i32 to index
      %14 = memref.load %arg1[%13] : memref<16xi32, #tpu.memory_space<smem>>
      %c0_i32_12 = arith.constant 0 : i32
      %15 = tpu.memref_slice %arg3[%14, %c0_i32_12] : memref<32x128xf32, #tpu.memory_space<any>> -> memref<1x128xf32, #tpu.memory_space<any>>
      %c0_i32_13 = arith.constant 0 : i32
      %16 = tpu.memref_slice %arg5[%11, %c0_i32_13] : memref<16x128xf32, #tpu.memory_space<vmem>> -> memref<1x128xf32, #tpu.memory_space<vmem>>
      %17 = tpu.memref_slice %arg6[%11] : memref<16x!tpu.dma_semaphore, #tpu.memory_space<semaphore_mem>> -> memref<1x!tpu.dma_semaphore, #tpu.memory_space<semaphore_mem>>
      %18 = tpu.memref_squeeze %17 : memref<1x!tpu.dma_semaphore, #tpu.memory_space<semaphore_mem>> -> memref<!tpu.dma_semaphore, #tpu.memory_space<semaphore_mem>>
      tpu.enqueue_dma source(%15 : memref<1x128xf32, #tpu.memory_space<any>>) target(%16 : memref<1x128xf32, #tpu.memory_space<vmem>>) target_semaphore(%18 : memref<!tpu.dma_semaphore, #tpu.memory_space<semaphore_mem>>)
    }
    %c16_i32_1 = arith.constant 16 : i32
    %c0_i32_2 = arith.constant 0 : i32
    %c16_i32_3 = arith.constant 16 : i32
    %2 = arith.addi %c0_i32_2, %c16_i32_3 : i32
    %c1_i32_4 = arith.constant 1 : i32
    scf.for %arg7 = %c0_i32_2 to %2 step %c1_i32_4  : i32 {
      %c1_i32_10 = arith.constant 1 : i32
      %10 = arith.muli %arg7, %c1_i32_10 : i32
      %c0_i32_11 = arith.constant 0 : i32
      %11 = arith.addi %c0_i32_11, %10 : i32
      %c0_i32_12 = arith.constant 0 : i32
      %c0_i32_13 = arith.constant 0 : i32
      %12 = tpu.memref_slice %arg3[%c0_i32_12, %c0_i32_13] : memref<32x128xf32, #tpu.memory_space<any>> -> memref<1x128xf32, #tpu.memory_space<any>>
      %c0_i32_14 = arith.constant 0 : i32
      %13 = tpu.memref_slice %arg5[%11, %c0_i32_14] : memref<16x128xf32, #tpu.memory_space<vmem>> -> memref<1x128xf32, #tpu.memory_space<vmem>>
      %14 = tpu.memref_slice %arg6[%11] : memref<16x!tpu.dma_semaphore, #tpu.memory_space<semaphore_mem>> -> memref<1x!tpu.dma_semaphore, #tpu.memory_space<semaphore_mem>>
      %15 = tpu.memref_squeeze %14 : memref<1x!tpu.dma_semaphore, #tpu.memory_space<semaphore_mem>> -> memref<!tpu.dma_semaphore, #tpu.memory_space<semaphore_mem>>
      tpu.wait_dma2 semaphore(%15 : memref<!tpu.dma_semaphore, #tpu.memory_space<semaphore_mem>>) src(%12 : memref<1x128xf32, #tpu.memory_space<any>>) dst(%13 : memref<1x128xf32, #tpu.memory_space<vmem>>)
    }
    %c16_i32_5 = arith.constant 16 : i32
    %c0 = arith.constant 0 : index
    %3 = memref.load %arg2[%c0] : memref<1xf32, #tpu.memory_space<smem>>
    %4 = vector.broadcast %3 : f32 to vector<1x1xf32>
    %5 = math.exp %4 : vector<1x1xf32>
    %c0_6 = arith.constant 0 : index
    %c0_7 = arith.constant 0 : index
    %6 = vector.load %arg5[%c0_6, %c0_7] : memref<16x128xf32, #tpu.memory_space<vmem>>, vector<16x128xf32>
    %7 = vector.broadcast %5 : vector<1x1xf32> to vector<16x128xf32>
    %8 = arith.mulf %6, %7 : vector<16x128xf32>
    %c0_8 = arith.constant 0 : index
    %c0_9 = arith.constant 0 : index
    %9 = vector.load %arg4[%c0_8, %c0_9] : memref<16x128xf32, #tpu.memory_space<vmem>>, vector<16x128xf32>
    tpu.vector_store %arg4[%c0_8, %c0_9], %8 {strides = array<i32>} : memref<16x128xf32, #tpu.memory_space<vmem>>, vector<16x128xf32>,
    return
  }
  func.func @transform_0(%arg0: i32, %arg1: memref<16xi32, #tpu.memory_space<smem>>) -> i32 {
    %c0_i32 = arith.constant 0 : i32
    %c0_i32_0 = arith.constant 0 : i32
    return %c0_i32 : i32
  }
  func.func @transform_2(%arg0: i32, %arg1: memref<16xi32, #tpu.memory_space<smem>>) -> (i32, i32) {
    %c0_i32 = arith.constant 0 : i32
    %c0_i32_0 = arith.constant 0 : i32
    return %arg0, %c0_i32 : i32, i32
  }
}

</mosaic_0001>

<llo_original>
// kernel: tpu_custom_call.1
$region0: #{tpu_custom_call.1}
  #allocation0 [shape = 'u32[]', space=smem, size = 0x4, offset = 0x4, fixed_abs, tag = 'smem constant byte address 0x4 - core index']
  #allocation1 [shape = 'u32[144,128]{1,0:T(1,128)}', space=vmem, size = 0x12000, scoped, tag = 'internal scratch']
  #allocation2 [shape = 'f32[16,128]{1,0:T(8,128)}', space=vmem, size = 0x2000, scoped, tag = 'scratch operand']
  #allocation3 [shape = 's32[16]{0}', space=sflag, size = 0x40, scoped, tag = 'scratch operand']
  #allocation4 [shape = 's32[1]{0}', space=sflag, size = 0x4, scoped, tag = 'scoped memory for tpu_custom_call.1']
  #allocation5 [shape = 'u8[512]{0}', space=smem, size = 0x200, scoped, tag = 'prefetched SMEM operand 0']
  #allocation6 [shape = 'f32[1]{0:T(128)S(6)}', space=smem, size = 0x200, scoped, tag = 'scoped memory for tpu_custom_call.1']
  #allocation9 [shape = 's32[]', space=sflag, size = 0x4, offset = 0, fixed_abs, tag = 'sflag constant byte address 0x0 - dummy sync flag']
  #allocation10 [shape = 's32[]', space=sflag, size = 0x4, offset = 0, fixed_abs, tag = 'sflag constant byte address 0x0 - dummy sync flag']
  #allocation11 [shape = 'u32[]', space=smem, size = 0x4, offset = 0x44, fixed_abs, tag = 'smem constant byte address 0x44 - assertion arg 0']
  #allocation12 [shape = 'u32[]', space=smem, size = 0x4, offset = 0x48, fixed_abs, tag = 'smem constant byte address 0x48 - assertion arg 1']
  %s0 = inlined_call_operand.vmem [shape: s32[16], index: 0, kind: input, shape index: {}]
  %s1 = inlined_call_operand.<no memory space> [shape: f32[1], index: 1, kind: input, shape index: {}]
  %s2 = inlined_call_operand.hbm [shape: f32[32,128], index: 2, kind: input, shape index: {}]
  %s3 = inlined_call_operand.hbm [shape: f32[16,128], index: 3, kind: output, shape index: {}]
  %s4 = sld [smem:[#allocation0]]
  $region32: #{tpu_custom_call.1} parent=0
    _
  %s6 = ssub.s32 1, %s4
  %s7 = scalar_select 0, %s6, %s4
  %s8 = sshll.u32 %s0, 4
  %s9 = int_to_ptr.vmem [resolvable:$true] %s8
  %11 = dma.vmem_to_smem %s9, 16, [#allocation5], [#allocation4]
  %12 = sst [smem:[#allocation6]] %s1
  %13 = dma.done [#allocation4], 16
  %14 = sfence
  $region1: #{tpu_custom_call.1} parent=0
    #allocation7 [shape = 'u8[8192]{0}', space=vmem, size = 0x2000, scoped, tag = 'output window, operand 0, single buffered']
    #allocation8 [shape = 's32[1]{0}', space=sflag, size = 0x4, scoped, tag = 'scoped memory for tpu_custom_call.1']
    %15 = vsyncpa [#allocation8], 0
    // Predicated region
    $region2: #{tpu_custom_call.1} parent=1 // pred_check
      _
    $region3: #{tpu_custom_call.1} parent=1 // pred_check_branch
      %17 = sbr.rel (0) target = $region5
    $region4: #{tpu_custom_call.1} parent=1 // pred_region
      _
    $region5: #{tpu_custom_call.1} parent=1 // pred_fallthru
      _
    %s18 = smul.u32 0, 16
    loop: start=0, step=1, limit=16
    $region6: #{tpu_custom_call.1} parent=1 // loop_pre_header
      _
    $region7: #{tpu_custom_call.1} parent=1 // loop_header
      %s20 = sphi 0, %s24
      %p21 = scmp.ge.s32.totalorder %s20, 16
    $region8: #{tpu_custom_call.1} parent=1 // loop_header_branch
      %23 = sbr.rel (%p21) target = $region12
    $region9: #{tpu_custom_call.1} parent=1 // loop_body
      %s25 = sadd.s32 %s18, %s20
      %s26 = sld [smem:[#allocation5 + %s25]]
      %s27 = smul.addr %s26, 16
      %s28 = scalar_lea.hbm %s2, %s27
      %s29 = scalar_lea.vmem [#allocation2], %s20
      %s30 = scalar_lea.sflag [#allocation3], %s20
      // Predicated region
      $region13: #{tpu_custom_call.1} parent=9 // pred_check
        _
      $region14: #{tpu_custom_call.1} parent=9 // pred_check_branch
        %32 = sbr.rel target = $region16
      $region15: #{tpu_custom_call.1} parent=9 // pred_region
        %33 = sst [smem:[#allocation11]] [#allocation10]
        %34 = sst [smem:[#allocation12]] [#allocation9]
      $region16: #{tpu_custom_call.1} parent=9 // pred_fallthru
        _
      %36 = shalt.err (0)
      %s38 = sshll.u32 %s29, 4
      %s39 = int_to_ptr.vmem [resolvable:$true] %s38
      %41 = dma.hbm_to_vmem [thread:$0]  %s28, 16, %s39, %s30
    $region10: #{tpu_custom_call.1} parent=1 // loop_footer
      %s24 = sadd.s32 1, %s20
    $region11: #{tpu_custom_call.1} parent=1 // loop_footer_branch
      %19 = sbr.rel target = $region7
    $region12: #{tpu_custom_call.1} parent=1 // loop_exit
      _
    loop: start=0, step=1, limit=16
    $region17: #{tpu_custom_call.1} parent=1 // loop_pre_header
      _
    $region18: #{tpu_custom_call.1} parent=1 // loop_header
      %s43 = sphi 0, %s47
      %p44 = scmp.ge.s32.totalorder %s43, 16
    $region19: #{tpu_custom_call.1} parent=1 // loop_header_branch
      %46 = sbr.rel (%p44) target = $region23
    $region20: #{tpu_custom_call.1} parent=1 // loop_body
      %s48 = scalar_lea.sflag [#allocation3], %s43
      %s49 = smul.u32 1, 1
      %s50 = sshll.u32 %s49, 4
      %51 = dma.done %s48, %s50
    $region21: #{tpu_custom_call.1} parent=1 // loop_footer
      %s47 = sadd.s32 1, %s43
    $region22: #{tpu_custom_call.1} parent=1 // loop_footer_branch
      %42 = sbr.rel target = $region18
    $region23: #{tpu_custom_call.1} parent=1 // loop_exit
      _
    %s52 = sld [smem:[#allocation6]]
    %v53 = vstv %s52
    %v54 = vmul.f32 %v53, 1.442695
    %v55 = vpow.pop %v54
    %v56 = vld [vmem:[#allocation2] sm:$0xff]
    %v57 = vld [vmem:[#allocation2 + $0x8] sm:$0xff]
    %v58 = vmul.f32 %v56, %v55
    %v59 = vmul.f32 %v57, %v55
    %60 = vst [vmem:[#allocation7] sm:$0xff] %v58
    %61 = vst [vmem:[#allocation7 + $0x8] sm:$0xff] %v59
    // Predicated region
    $region24: #{tpu_custom_call.1} parent=1 // pred_check
      _
    $region25: #{tpu_custom_call.1} parent=1 // pred_check_branch
      %63 = sbr.rel (0) target = $region27
    $region26: #{tpu_custom_call.1} parent=1 // pred_region
      %s65 = ssub.s32 256, 256
      %66 = vsyncadd [#allocation8], %s65
      %s67 = sshll.u32 [#allocation7], 4
      %s68 = int_to_ptr.vmem [resolvable:$true] %s67
      %73 = dma.vmem_to_hbm [thread:$0]  %s68, 256, %s3, [#allocation8], 128, 128, 8
    $region27: #{tpu_custom_call.1} parent=1 // pred_fallthru
      _
    // Predicated region
    $region28: #{tpu_custom_call.1} parent=1 // pred_check
      _
    $region29: #{tpu_custom_call.1} parent=1 // pred_check_branch
      %75 = sbr.rel (0) target = $region31
    $region30: #{tpu_custom_call.1} parent=1 // pred_region
      %76 = dma.done [#allocation8], 256
    $region31: #{tpu_custom_call.1} parent=1 // pred_fallthru
      _
    %77 = vsyncpa [#allocation8], 1
  %78 = vsyncmov [#allocation3]
  %s79 = vpop.sfrf %78
  %p80 = scmp.eq.s32.totalorder %s79, 0
  %p81 = pneg %p80
  %83 = shalt.err (%p81)
  %s84 = scalar_lea.sflag [#allocation3], 1
  %85 = vsyncmov %s84
  %s86 = vpop.sfrf %85
  %p87 = scmp.eq.s32.totalorder %s86, 0
  %p88 = pneg %p87
  %90 = shalt.err (%p88)
  %s91 = scalar_lea.sflag [#allocation3], 2
  %92 = vsyncmov %s91
  %s93 = vpop.sfrf %92
  %p94 = scmp.eq.s32.totalorder %s93, 0
  %p95 = pneg %p94
  %97 = shalt.err (%p95)
  %s98 = scalar_lea.sflag [#allocation3], 3
  %99 = vsyncmov %s98
  %s100 = vpop.sfrf %99
  %p101 = scmp.eq.s32.totalorder %s100, 0
  %p102 = pneg %p101
  %104 = shalt.err (%p102)
  %s105 = scalar_lea.sflag [#allocation3], 4
  %106 = vsyncmov %s105
  %s107 = vpop.sfrf %106
  %p108 = scmp.eq.s32.totalorder %s107, 0
  %p109 = pneg %p108
  %111 = shalt.err (%p109)
  %s112 = scalar_lea.sflag [#allocation3], 5
  %113 = vsyncmov %s112
  %s114 = vpop.sfrf %113
  %p115 = scmp.eq.s32.totalorder %s114, 0
  %p116 = pneg %p115
  %118 = shalt.err (%p116)
  %s119 = scalar_lea.sflag [#allocation3], 6
  %120 = vsyncmov %s119
  %s121 = vpop.sfrf %120
  %p122 = scmp.eq.s32.totalorder %s121, 0
  %p123 = pneg %p122
  %125 = shalt.err (%p123)
  %s126 = scalar_lea.sflag [#allocation3], 7
  %127 = vsyncmov %s126
  %s128 = vpop.sfrf %127
  %p129 = scmp.eq.s32.totalorder %s128, 0
  %p130 = pneg %p129
  %132 = shalt.err (%p130)
  %s133 = scalar_lea.sflag [#allocation3], 8
  %134 = vsyncmov %s133
  %s135 = vpop.sfrf %134
  %p136 = scmp.eq.s32.totalorder %s135, 0
  %p137 = pneg %p136
  %139 = shalt.err (%p137)
  %s140 = scalar_lea.sflag [#allocation3], 9
  %141 = vsyncmov %s140
  %s142 = vpop.sfrf %141
  %p143 = scmp.eq.s32.totalorder %s142, 0
  %p144 = pneg %p143
  %146 = shalt.err (%p144)
  %s147 = scalar_lea.sflag [#allocation3], 10
  %148 = vsyncmov %s147
  %s149 = vpop.sfrf %148
  %p150 = scmp.eq.s32.totalorder %s149, 0
  %p151 = pneg %p150
  %153 = shalt.err (%p151)
  %s154 = scalar_lea.sflag [#allocation3], 11
  %155 = vsyncmov %s154
  %s156 = vpop.sfrf %155
  %p157 = scmp.eq.s32.totalorder %s156, 0
  %p158 = pneg %p157
  %160 = shalt.err (%p158)
  %s161 = scalar_lea.sflag [#allocation3], 12
  %162 = vsyncmov %s161
  %s163 = vpop.sfrf %162
  %p164 = scmp.eq.s32.totalorder %s163, 0
  %p165 = pneg %p164
  %167 = shalt.err (%p165)
  %s168 = scalar_lea.sflag [#allocation3], 13
  %169 = vsyncmov %s168
  %s170 = vpop.sfrf %169
  %p171 = scmp.eq.s32.totalorder %s170, 0
  %p172 = pneg %p171
  %174 = shalt.err (%p172)
  %s175 = scalar_lea.sflag [#allocation3], 14
  %176 = vsyncmov %s175
  %s177 = vpop.sfrf %176
  %p178 = scmp.eq.s32.totalorder %s177, 0
  %p179 = pneg %p178
  %181 = shalt.err (%p179)
  %s182 = scalar_lea.sflag [#allocation3], 15
  %183 = vsyncmov %s182
  %s184 = vpop.sfrf %183
  %p185 = scmp.eq.s32.totalorder %s184, 0
  %p186 = pneg %p185
  %188 = shalt.err (%p186)

</llo_original>
